<compile_context>
chip_gen: v5e
topology: v5e:2x2
jax: 0.10.0
libtpu: 0.0.40
codegen_flags: <defaults>
</compile_context>

<pallas_src>
import functools

import jax
import jax.numpy as jnp
from jax import lax
from jax.experimental import pallas as pl
from jax.experimental.pallas import tpu as pltpu


def _distill_kl_kernel(ys_ref, yt_ref, o_ref, *, inv_t, block_n,
                       steps_per_split, n_rows, needs_mask):
    """Partial (unscaled) KL reduction for one row-tile of logits.

    ys_ref: (block_n, C) student logits tile
    yt_ref: (block_n, C) teacher logits tile
    o_ref:  (1, 1)       per-core running partial sum (resident across grid
                         axis 1, one row of the (num_splits, 1) output)
    """
    p = pl.program_id(0)          # TensorCore split (parallel)
    i = pl.program_id(1)          # reduction step within this split

    @pl.when(i == 0)
    def _():
        o_ref[...] = jnp.zeros_like(o_ref)

    ys = ys_ref[...].astype(jnp.float32) * inv_t
    yt = yt_ref[...].astype(jnp.float32) * inv_t

    # Numerically stable log-softmax along the class (lane) axis.
    ys_sh = ys - jnp.max(ys, axis=-1, keepdims=True)
    log_ps = ys_sh - jnp.log(jnp.sum(jnp.exp(ys_sh), axis=-1, keepdims=True))

    # Teacher: compute exp once, reuse for denominator and p_t (2 exps total).
    yt_sh = yt - jnp.max(yt, axis=-1, keepdims=True)
    e_t = jnp.exp(yt_sh)
    denom = jnp.sum(e_t, axis=-1, keepdims=True)
    log_pt = yt_sh - jnp.log(denom)
    p_t = e_t / denom

    per_elem = p_t * (log_pt - log_ps)

    # Lane reduce first -> (block_n, 1); masking commutes with the class sum.
    row_sums = jnp.sum(per_elem, axis=-1, keepdims=True)

    if needs_mask:
        # Mask rows past the true batch size (padded tail / clamped duplicate
        # blocks).  Select (not multiply) so garbage/NaN rows cannot leak.
        global_start = (p * steps_per_split + i) * block_n
        row_ids = global_start + lax.broadcasted_iota(
            jnp.int32, row_sums.shape, 0)
        row_sums = jnp.where(row_ids < n_rows, row_sums, 0.0)

    o_ref[...] += jnp.sum(row_sums, axis=0, keepdims=True)


@functools.partial(jax.jit, static_argnums=(2,))
def _distill_kl(y_s, y_t, temperature):
    """y_s, y_t: (N, C) logits -> scalar distillation loss."""
    n, c = y_s.shape
    itemsize = jnp.dtype(y_s.dtype).itemsize

    # ---- tile sizing from a VMEM byte budget ------------------------------
    # Input working set per row = 2 inputs * 2 pipeline buffers * C * itemsize.
    # Keep inputs within ~8 MiB; f32 intermediates (ys_sh, log_ps, e_t,
    # per_elem, ...) add a few more tiles, all comfortably under the 32 MiB
    # limit requested below (fits v5e/v6e/v7x scoped VMEM).
    input_budget_bytes = 8 * 1024 * 1024
    rows_by_budget = max(8, input_budget_bytes // (4 * c * itemsize))
    rows_by_budget = (rows_by_budget // 8) * 8
    if rows_by_budget >= n:
        block_n = n                       # full dim -> no (8,128) constraint
    else:
        block_n = rows_by_budget          # multiple of 8 sublanes

    total_blocks = pl.cdiv(n, block_n)

    # ---- split the reduction across TensorCores (helps v7x, harmless else) --
    num_splits = 2 if total_blocks >= 2 else 1
    steps_per_split = pl.cdiv(total_blocks, num_splits)

    needs_mask = (n % block_n != 0) or (num_splits * steps_per_split !=
                                        total_blocks)

    last_block = total_blocks - 1

    def in_map(p, i):
        # Clamp so duplicate (beyond-last) steps re-read a valid block; their
        # contribution is masked to zero inside the kernel.
        return (jnp.minimum(p * steps_per_split + i, last_block), 0)

    kernel = functools.partial(
        _distill_kl_kernel,
        inv_t=1.0 / float(temperature),
        block_n=block_n,
        steps_per_split=steps_per_split,
        n_rows=n,
        needs_mask=needs_mask,
    )

    cost = pl.CostEstimate(
        flops=10 * n * c,
        transcendentals=2 * n * c,
        bytes_accessed=2 * n * c * itemsize + num_splits * 4,
    )

    partials = pl.pallas_call(
        kernel,
        out_shape=jax.ShapeDtypeStruct((num_splits, 1), jnp.float32),
        grid_spec=pltpu.PrefetchScalarGridSpec(
            num_scalar_prefetch=0,
            grid=(num_splits, steps_per_split),
            in_specs=[
                pl.BlockSpec((block_n, c), in_map),
                pl.BlockSpec((block_n, c), in_map),
            ],
            out_specs=pl.BlockSpec((1, 1), lambda p, i: (p, 0)),
        ),
        compiler_params=pltpu.CompilerParams(
            dimension_semantics=("parallel", "arbitrary"),
            vmem_limit_bytes=32 * 1024 * 1024,
        ),
        cost_estimate=cost,
    )(y_s, y_t)

    scale = (float(temperature) ** 2) / n
    return jnp.sum(partials) * scale


class DistillKLPallas:
    """JAX/Pallas equivalent of DistillKL(T).forward(y_s, y_t)."""

    def __init__(self, T=4.0):
        self.T = float(T)

    def forward(self, y_s, y_t):
        return _distill_kl(y_s, y_t, self.T)

    __call__ = forward


def _reference_distill_kl(y_s, y_t, T):
    """Pure-JAX reference matching PyTorch semantics.

    F.kl_div(log_p_s, p_t, size_average=False) == sum(p_t * (log p_t - log p_s))
    """
    log_ps = jax.nn.log_softmax(y_s.astype(jnp.float32) / T, axis=1)
    log_pt = jax.nn.log_softmax(y_t.astype(jnp.float32) / T, axis=1)
    p_t = jnp.exp(log_pt)
    kl = jnp.sum(p_t * (log_pt - log_ps))
    return kl * (T ** 2) / y_s.shape[0]


if __name__ == "__main__":
    T = 4.0
    model = DistillKLPallas(T=T)
    key = jax.random.PRNGKey(0)

    # Case 1: batch=16, classes=128 (lane-dense class axis), f32 logits.
    ks, kt, key = jax.random.split(key, 3)
    y_s = jax.random.normal(ks, (16, 128), jnp.float32) * 3.0
    y_t = jax.random.normal(kt, (16, 128), jnp.float32) * 3.0
    loss = model(y_s, y_t)
    jax.block_until_ready(loss)
    ref = _reference_distill_kl(y_s, y_t, T)
    assert loss.shape == ()
    assert jnp.isfinite(loss)
    assert jnp.allclose(loss, ref, atol=1e-4, rtol=1e-4), (loss, ref)

    # Case 2: non-128 class count, bf16 logits (kernel upcasts internally).
    ks, kt, key = jax.random.split(key, 3)
    y_s2 = (jax.random.normal(ks, (40, 96), jnp.float32) * 2.0).astype(jnp.bfloat16)
    y_t2 = (jax.random.normal(kt, (40, 96), jnp.float32) * 2.0).astype(jnp.bfloat16)
    loss2 = model(y_s2, y_t2)
    jax.block_until_ready(loss2)
    ref2 = _reference_distill_kl(y_s2, y_t2, T)
    assert jnp.isfinite(loss2)
    assert jnp.allclose(loss2, ref2, atol=2e-3, rtol=2e-3), (loss2, ref2)

    print("KERNEL_OK")
</pallas_src>

<mosaic_0001>
module attributes {stable_mosaic.version = 11 : i64} {
  func.func @_distill_kl_kernel(%arg0: i32, %arg1: i32, %arg2: memref<16x128xf32, #tpu.memory_space<vmem>>, %arg3: memref<16x128xf32, #tpu.memory_space<vmem>>, %arg4: memref<1x1xf32, #tpu.memory_space<vmem>>) attributes {dimension_semantics = [#tpu.dimension_semantics<parallel>, #tpu.dimension_semantics<arbitrary>], iteration_bounds = array<i64: 1, 1>, scalar_prefetch = 0 : i64, scratch_operands = 0 : i64, tpu.core_type = #tpu.core_type<tc>, window_params = [{transform_indices = @transform_0, window_bounds = array<i64: 16, 128>}, {transform_indices = @transform_1, window_bounds = array<i64: 16, 128>}, {transform_indices = @transform_2, window_bounds = array<i64: 1, 1>}]} {
    %c0_i32 = arith.constant 0 : i32
    %0 = arith.cmpi eq, %arg1, %c0_i32 : i32
    %1 = arith.extui %0 : i1 to i32
    %c0_i32_0 = arith.constant 0 : i32
    %2 = arith.cmpi ne, %1, %c0_i32_0 : i32
    scf.if %2 {
      %cst_15 = arith.constant 0.000000e+00 : f32
      %40 = vector.broadcast %cst_15 : f32 to vector<1x1xf32>
      %c0_16 = arith.constant 0 : index
      %c0_17 = arith.constant 0 : index
      %41 = vector.load %arg4[%c0_16, %c0_17] : memref<1x1xf32, #tpu.memory_space<vmem>>, vector<1x1xf32>
      tpu.vector_store %arg4[%c0_16, %c0_17], %40 {strides = array<i32>} : memref<1x1xf32, #tpu.memory_space<vmem>>, vector<1x1xf32>,
    } else {
    }
    %c0 = arith.constant 0 : index
    %c0_1 = arith.constant 0 : index
    %3 = vector.load %arg2[%c0, %c0_1] : memref<16x128xf32, #tpu.memory_space<vmem>>, vector<16x128xf32>
    %cst = arith.constant 2.500000e-01 : f32
    %4 = vector.broadcast %cst : f32 to vector<16x128xf32>
    %5 = arith.mulf %3, %4 : vector<16x128xf32>
    %c0_2 = arith.constant 0 : index
    %c0_3 = arith.constant 0 : index
    %6 = vector.load %arg3[%c0_2, %c0_3] : memref<16x128xf32, #tpu.memory_space<vmem>>, vector<16x128xf32>
    %cst_4 = arith.constant 2.500000e-01 : f32
    %7 = vector.broadcast %cst_4 : f32 to vector<16x128xf32>
    %8 = arith.mulf %6, %7 : vector<16x128xf32>
    %cst_5 = arith.constant dense<0xFF800000> : vector<16xf32>
    %9 = vector.multi_reduction <maximumf>, %5, %cst_5 [1] : vector<16x128xf32> to vector<16xf32>
    %10 = vector.shape_cast %9 : vector<16xf32> to vector<16x1xf32>
    %11 = vector.broadcast %10 : vector<16x1xf32> to vector<16x128xf32>
    %12 = arith.subf %5, %11 : vector<16x128xf32>
    %13 = math.exp %12 : vector<16x128xf32>
    %cst_6 = arith.constant dense<0.000000e+00> : vector<16xf32>
    %14 = vector.multi_reduction <add>, %13, %cst_6 [1] : vector<16x128xf32> to vector<16xf32>
    %15 = vector.shape_cast %14 : vector<16xf32> to vector<16x1xf32>
    %16 = math.log %15 : vector<16x1xf32>
    %17 = vector.broadcast %16 : vector<16x1xf32> to vector<16x128xf32>
    %18 = arith.subf %12, %17 : vector<16x128xf32>
    %cst_7 = arith.constant dense<0xFF800000> : vector<16xf32>
    %19 = vector.multi_reduction <maximumf>, %8, %cst_7 [1] : vector<16x128xf32> to vector<16xf32>
    %20 = vector.shape_cast %19 : vector<16xf32> to vector<16x1xf32>
    %21 = vector.broadcast %20 : vector<16x1xf32> to vector<16x128xf32>
    %22 = arith.subf %8, %21 : vector<16x128xf32>
    %23 = math.exp %22 : vector<16x128xf32>
    %cst_8 = arith.constant dense<0.000000e+00> : vector<16xf32>
    %24 = vector.multi_reduction <add>, %23, %cst_8 [1] : vector<16x128xf32> to vector<16xf32>
    %25 = vector.shape_cast %24 : vector<16xf32> to vector<16x1xf32>
    %26 = math.log %25 : vector<16x1xf32>
    %27 = vector.broadcast %26 : vector<16x1xf32> to vector<16x128xf32>
    %28 = arith.subf %22, %27 : vector<16x128xf32>
    %29 = vector.broadcast %25 : vector<16x1xf32> to vector<16x128xf32>
    %30 = arith.divf %23, %29 : vector<16x128xf32>
    %31 = arith.subf %28, %18 : vector<16x128xf32>
    %32 = arith.mulf %30, %31 : vector<16x128xf32>
    %cst_9 = arith.constant dense<0.000000e+00> : vector<16xf32>
    %33 = vector.multi_reduction <add>, %32, %cst_9 [1] : vector<16x128xf32> to vector<16xf32>
    %34 = vector.shape_cast %33 : vector<16xf32> to vector<16x1xf32>
    %c0_10 = arith.constant 0 : index
    %c0_11 = arith.constant 0 : index
    %35 = vector.load %arg4[%c0_10, %c0_11] : memref<1x1xf32, #tpu.memory_space<vmem>>, vector<1x1xf32>
    %cst_12 = arith.constant dense<0.000000e+00> : vector<1xf32>
    %36 = vector.multi_reduction <add>, %34, %cst_12 [0] : vector<16x1xf32> to vector<1xf32>
    %37 = vector.shape_cast %36 : vector<1xf32> to vector<1x1xf32>
    %38 = arith.addf %35, %37 : vector<1x1xf32>
    %c0_13 = arith.constant 0 : index
    %c0_14 = arith.constant 0 : index
    %39 = vector.load %arg4[%c0_13, %c0_14] : memref<1x1xf32, #tpu.memory_space<vmem>>, vector<1x1xf32>
    tpu.vector_store %arg4[%c0_13, %c0_14], %38 {strides = array<i32>} : memref<1x1xf32, #tpu.memory_space<vmem>>, vector<1x1xf32>,
    return
  }
  func.func @transform_0(%arg0: i32, %arg1: i32) -> (i32, i32) {
    %c1_i32 = arith.constant 1 : i32
    %0 = arith.muli %arg0, %c1_i32 : i32
    %1 = arith.addi %0, %arg1 : i32
    %c0_i32 = arith.constant 0 : i32
    %2 = arith.minsi %1, %c0_i32 : i32
    %c0_i32_0 = arith.constant 0 : i32
    %c0_i32_1 = arith.constant 0 : i32
    return %2, %c0_i32_0 : i32, i32
  }
  func.func @transform_1(%arg0: i32, %arg1: i32) -> (i32, i32) {
    %c1_i32 = arith.constant 1 : i32
    %0 = arith.muli %arg0, %c1_i32 : i32
    %1 = arith.addi %0, %arg1 : i32
    %c0_i32 = arith.constant 0 : i32
    %2 = arith.minsi %1, %c0_i32 : i32
    %c0_i32_0 = arith.constant 0 : i32
    %c0_i32_1 = arith.constant 0 : i32
    return %2, %c0_i32_0 : i32, i32
  }
  func.func @transform_2(%arg0: i32, %arg1: i32) -> (i32, i32) {
    %c0_i32 = arith.constant 0 : i32
    %c0_i32_0 = arith.constant 0 : i32
    return %arg0, %c0_i32 : i32, i32
  }
}

</mosaic_0001>

<llo_original>
// kernel: _distill_kl.1
$region0: #{_distill_kl.1}
  #allocation0 [shape = 'u32[]', space=smem, size = 0x4, offset = 0x4, fixed_abs, tag = 'smem constant byte address 0x4 - core index']
  #allocation1 [shape = 'u32[72,128]{1,0:T(1,128)}', space=vmem, size = 0x9000, scoped, tag = 'internal scratch']
  %s0 = inlined_call_operand.hbm [shape: f32[16,128], index: 0, kind: input, shape index: {}]
  %s1 = inlined_call_operand.hbm [shape: f32[16,128], index: 1, kind: input, shape index: {}]
  %s2 = inlined_call_operand.hbm [shape: f32[1,1], index: 2, kind: output, shape index: {}]
  %s3 = sld [smem:[#allocation0]]
  $region30: #{_distill_kl.1} parent=0
    _
  %s5 = ssub.s32 1, %s3
  %s6 = scalar_select 0, %s5, %s3
  $region1: #{_distill_kl.1} parent=0
    #allocation2 [shape = 'u8[8192]{0}', space=vmem, size = 0x2000, scoped, tag = 'input window, operand 0, single buffered']
    #allocation3 [shape = 's32[1]{0}', space=sflag, size = 0x4, scoped, tag = 'scoped memory for _distill_kl.1']
    #allocation4 [shape = 's32[1]{0}', space=sflag, size = 0x4, scoped, tag = 'scoped memory for _distill_kl.1']
    #allocation5 [shape = 'u8[8192]{0}', space=vmem, size = 0x2000, scoped, tag = 'input window, operand 1, single buffered']
    #allocation6 [shape = 's32[1]{0}', space=sflag, size = 0x4, scoped, tag = 'scoped memory for _distill_kl.1']
    #allocation7 [shape = 'u8[512]{0}', space=vmem, size = 0x400, scoped, tag = 'output window, operand 0, single buffered']
    %7 = vsyncpa [#allocation3], 0
    %8 = vsyncpa [#allocation6], 0
    %9 = vsyncpa [#allocation4], 0
    // Predicated region
    $region2: #{_distill_kl.1} parent=1 // pred_check
      _
    $region3: #{_distill_kl.1} parent=1 // pred_check_branch
      %11 = sbr.rel (0) target = $region5
    $region4: #{_distill_kl.1} parent=1 // pred_region
      %s12 = sadd.s32 0, 0
      %p13 = scmp.lt.s32.totalorder %s12, 0
      %s14 = scalar_select %p13, %s12, 0
      %s15 = smul.u32 2, %s14
      %17 = vsyncadd [#allocation3], 0
      %s18 = smul.addr %s15, 8
      %s19 = scalar_lea.hbm %s0, %s18
      %s20 = sshll.u32 %s19, 4
      %s21 = int_to_ptr.hbm [resolvable:$true] %s20
      %s22 = sshll.u32 [#allocation2], 4
      %s23 = int_to_ptr.vmem [resolvable:$true] %s22
      %28 = dma.hbm_to_vmem [thread:$0]  %s21, 256, %s23, [#allocation3], 128, 128, 8
    $region5: #{_distill_kl.1} parent=1 // pred_fallthru
      _
    // Predicated region
    $region6: #{_distill_kl.1} parent=1 // pred_check
      _
    $region7: #{_distill_kl.1} parent=1 // pred_check_branch
      %30 = sbr.rel (0) target = $region9
    $region8: #{_distill_kl.1} parent=1 // pred_region
      %s31 = sadd.s32 0, 0
      %p32 = scmp.lt.s32.totalorder %s31, 0
      %s33 = scalar_select %p32, %s31, 0
      %s34 = smul.u32 2, %s33
      %36 = vsyncadd [#allocation6], 0
      %s37 = smul.addr %s34, 8
      %s38 = scalar_lea.hbm %s1, %s37
      %s39 = sshll.u32 %s38, 4
      %s40 = int_to_ptr.hbm [resolvable:$true] %s39
      %s41 = sshll.u32 [#allocation5], 4
      %s42 = int_to_ptr.vmem [resolvable:$true] %s41
      %47 = dma.hbm_to_vmem [thread:$0]  %s40, 256, %s42, [#allocation6], 128, 128, 8
    $region9: #{_distill_kl.1} parent=1 // pred_fallthru
      _
    // Predicated region
    $region10: #{_distill_kl.1} parent=1 // pred_check
      _
    $region11: #{_distill_kl.1} parent=1 // pred_check_branch
      %49 = sbr.rel (0) target = $region13
    $region12: #{_distill_kl.1} parent=1 // pred_region
      %51 = dma.done [#allocation3], 256
    $region13: #{_distill_kl.1} parent=1 // pred_fallthru
      _
    // Predicated region
    $region14: #{_distill_kl.1} parent=1 // pred_check
      _
    $region15: #{_distill_kl.1} parent=1 // pred_check_branch
      %53 = sbr.rel (0) target = $region17
    $region16: #{_distill_kl.1} parent=1 // pred_region
      %55 = dma.done [#allocation6], 256
    $region17: #{_distill_kl.1} parent=1 // pred_fallthru
      _
    %s56 = sadd.s32 0, 0
    %p57 = scmp.lt.s32.totalorder %s56, 0
    %s58 = scalar_select %p57, %s56, 0
    %s59 = smul.u32 2, %s58
    %s60 = sadd.s32 0, 0
    %p61 = scmp.lt.s32.totalorder %s60, 0
    %s62 = scalar_select %p61, %s60, 0
    %s63 = smul.u32 2, %s62
    %p64 = scmp.eq.s32.totalorder 0, 0
    // Predicated region
    $region18: #{_distill_kl.1} parent=1 // pred_check
      %p65 = pneg %p64
    $region19: #{_distill_kl.1} parent=1 // pred_check_branch
      %67 = sbr.rel (%p65) target = $region21
    $region20: #{_distill_kl.1} parent=1 // pred_region
      %vm68 = vcmask 0
      %69 = vst.msk [vmem:[#allocation7] sm:$0x1] %vm68, 0.0
    $region21: #{_distill_kl.1} parent=1 // pred_fallthru
      _
    %v70 = vld [vmem:[#allocation2] sm:$0xff]
    %v71 = vld [vmem:[#allocation2 + $0x8] sm:$0xff]
    %v72 = vmul.f32 %v70, 0.25
    %v73 = vmul.f32 %v71, 0.25
    %v74 = vld [vmem:[#allocation5] sm:$0xff]
    %v75 = vld [vmem:[#allocation5 + $0x8] sm:$0xff]
    %v76 = vmul.f32 %v74, 0.25
    %v77 = vmul.f32 %v75, 0.25
    %78 = vmax.xlane.f32.xlu0 %v72
    %v79 = vpop.xlane.xlu0 %78
    %80 = vmax.xlane.f32.xlu0 %v73
    %v81 = vpop.xlane.xlu0 %80
    %v82 = vsub.f32 %v72, %v79
    %v83 = vsub.f32 %v73, %v81
    %v84 = vmul.f32 %v82, 1.442695
    %v85 = vpow.pop %v84
    %v86 = vmul.f32 %v83, 1.442695
    %v87 = vpow.pop %v86
    %88 = vadd.xlane.f32.xlu0 %v85
    %v89 = vpop.xlane.xlu0 %88
    %90 = vadd.xlane.f32.xlu0 %v87
    %v91 = vpop.xlane.xlu0 %90
    %v92 = vlog2.pop %v89
    %v93 = vmul.f32 %v92, 0.6931472
    %v94 = vlog2.pop %v91
    %v95 = vmul.f32 %v94, 0.6931472
    %v96 = vsub.f32 %v82, %v93
    %v97 = vsub.f32 %v83, %v95
    %98 = vmax.xlane.f32.xlu0 %v76
    %v99 = vpop.xlane.xlu0 %98
    %100 = vmax.xlane.f32.xlu0 %v77
    %v101 = vpop.xlane.xlu0 %100
    %v102 = vsub.f32 %v76, %v99
    %v103 = vsub.f32 %v77, %v101
    %v104 = vmul.f32 %v102, 1.442695
    %v105 = vpow.pop %v104
    %v106 = vmul.f32 %v103, 1.442695
    %v107 = vpow.pop %v106
    %108 = vadd.xlane.f32.xlu0 %v105
    %v109 = vpop.xlane.xlu0 %108
    %110 = vadd.xlane.f32.xlu0 %v107
    %v111 = vpop.xlane.xlu0 %110
    %v112 = vlog2.pop %v109
    %v113 = vmul.f32 %v112, 0.6931472
    %v114 = vlog2.pop %v111
    %v115 = vmul.f32 %v114, 0.6931472
    %v116 = vsub.f32 %v102, %v113
    %v117 = vsub.f32 %v103, %v115
    %v118 = vrcp.pop %v109
    %v119 = vmul.f32 %v109, %v118
    %v120 = vsub.f32 1.0, %v119
    %v121 = vmul.f32 %v118, %v120
    %v122 = vadd.f32 %v118, %v121
    %vm123 = vweird.f32 %v109
    %vm124 = vweird.f32 %v118
    %vm125 = vmor %vm123, %vm124
    %v126 = vsel %vm125, %v118, %v122
    %v127 = vand.u32 2147483647, %v109
    %vm128 = vcmp.eq.f32.partialorder %v127, 8.507059e+37
    %v129 = vand.u32 %v109, 2147483648
    %v130 = vor.u32 1.1754944e-38, %v129
    %v131 = vsel %vm128, %v130, %v126
    %v132 = vmul.f32 %v105, %v131
    %v133 = vrcp.pop %v111
    %v134 = vmul.f32 %v111, %v133
    %v135 = vsub.f32 1.0, %v134
    %v136 = vmul.f32 %v133, %v135
    %v137 = vadd.f32 %v133, %v136
    %vm138 = vweird.f32 %v111
    %vm139 = vweird.f32 %v133
    %vm140 = vmor %vm138, %vm139
    %v141 = vsel %vm140, %v133, %v137
    %v142 = vand.u32 2147483647, %v111
    %vm143 = vcmp.eq.f32.partialorder %v142, 8.507059e+37
    %v144 = vand.u32 %v111, 2147483648
    %v145 = vor.u32 1.1754944e-38, %v144
    %v146 = vsel %vm143, %v145, %v141
    %v147 = vmul.f32 %v107, %v146
    %v148 = vsub.f32 %v116, %v96
    %v149 = vsub.f32 %v117, %v97
    %v150 = vmul.f32 %v132, %v148
    %v151 = vmul.f32 %v147, %v149
    %152 = vadd.xlane.f32.xlu0 %v150
    %v153 = vpop.xlane.xlu0 %152
    %154 = vadd.xlane.f32.xlu0 %v151
    %v155 = vpop.xlane.xlu0 %154
    %v156 = vld [vmem:[#allocation7] sm:$0x1]
    %v157 = vadd.f32 %v153, %v155
    %v158 = vrot.slane %v157, 4
    %v159 = vadd.f32 %v157, %v158
    %v160 = vrot.slane %v159, 2
    %v161 = vadd.f32 %v159, %v160
    %v162 = vrot.slane %v161, 1
    %v163 = vadd.f32 %v161, %v162
    %v164 = vadd.f32 %v156, %v163
    %vm165 = vcmask 0
    %166 = vst.msk [vmem:[#allocation7] sm:$0x1] %vm165, %v164
    // Predicated region
    $region22: #{_distill_kl.1} parent=1 // pred_check
      _
    $region23: #{_distill_kl.1} parent=1 // pred_check_branch
      %168 = sbr.rel (0) target = $region25
    $region24: #{_distill_kl.1} parent=1 // pred_region
      %170 = vsyncadd [#allocation4], 0
      %s172 = sshll.u32 [#allocation7], 4
      %s173 = int_to_ptr.vmem [resolvable:$true] %s172
      %s174 = sshll.u32 %s2, 4
      %s175 = int_to_ptr.hbm [resolvable:$true] %s174
      %177 = dma.vmem_to_hbm [thread:$0]  %s173, 16, %s175, [#allocation4]
    $region25: #{_distill_kl.1} parent=1 // pred_fallthru
      _
    // Predicated region
    $region26: #{_distill_kl.1} parent=1 // pred_check
      _
    $region27: #{_distill_kl.1} parent=1 // pred_check_branch
      %179 = sbr.rel (0) target = $region29
    $region28: #{_distill_kl.1} parent=1 // pred_region
      %181 = dma.done [#allocation4], 16
    $region29: #{_distill_kl.1} parent=1 // pred_fallthru
      _
    %182 = vsyncpa [#allocation3], 1
    %183 = vsyncpa [#allocation6], 1
    %184 = vsyncpa [#allocation4], 1

</llo_original>
